<compile_context>
chip_gen: v7x
topology: tpu7x:2x2x1
jax: 0.10.0
libtpu: 0.0.40
codegen_flags: <defaults>
</compile_context>

<pallas_src>
import functools

import jax
import jax.numpy as jnp
from jax.experimental import pallas as pl
from jax.experimental.pallas import tpu as pltpu


# ----------------------------------------------------------------------------- kernel


@functools.lru_cache(maxsize=None)
def _make_codebook_kernel(emit_dist):
    """Kernel over a (token-tile i, codebook-tile j) grid.

    The codebook axis (j) is innermost and "arbitrary": a running max/argmax
    scratch accumulates across codebook tiles and the index is stored once at
    the last j for each token tile.
    """

    def kernel(x_ref, embed_t_ref, e_sq_ref, ind_ref, *rest):
        if emit_dist:
            dist_ref, max_sc, arg_sc = rest
        else:
            max_sc, arg_sc = rest

        j = pl.program_id(1)
        tc = e_sq_ref.shape[-1]

        x = x_ref[...]                                    # (tm, D)   f32
        embed_t = embed_t_ref[...]                        # (D, tc)   f32 / bf16
        e_sq = e_sq_ref[...]                              # (1, tc)   f32 (+inf on padded cols)

        # dist = -( ||x||^2 - 2 x @ embed^T + ||embed||^2 )            (tm, tc)
        x_sq = jnp.sum(x * x, axis=-1, keepdims=True)     # (tm, 1)
        xe = jnp.dot(x.astype(embed_t.dtype), embed_t,
                     preferred_element_type=jnp.float32)  # MXU, f32 accumulation
        dist = -(x_sq - 2.0 * xe + e_sq)

        if emit_dist:
            # dist.masked_fill(dist >= -1e-06, 0) -- dominant, lane-dense HBM writeback
            dist_ref[...] = jnp.where(dist >= -1e-06, 0.0, dist).astype(dist_ref.dtype)

        # Running max / argmax across codebook tiles, kept lane-oriented (1, tm).
        local_max = jnp.max(dist, axis=-1)[None, :]
        local_arg = (jnp.argmax(dist, axis=-1).astype(jnp.int32) + j * tc)[None, :]

        @pl.when(j == 0)
        def _():
            max_sc[...] = local_max
            arg_sc[...] = local_arg

        @pl.when(j > 0)
        def _():
            # strict '>' keeps the first (lowest) index on exact ties -> matches argmax.
            better = local_max > max_sc[...]
            max_sc[...] = jnp.where(better, local_max, max_sc[...])
            arg_sc[...] = jnp.where(better, local_arg, arg_sc[...])

        @pl.when(j == pl.num_programs(1) - 1)
        def _():
            ind_ref[...] = arg_sc[...]                    # lane-dense (1, tm) store

    return kernel


# ----------------------------------------------------------------------------- sizing


def _round_up(v, m):
    return ((v + m - 1) // m) * m


@functools.lru_cache(maxsize=None)
def _vmem_caps():
    """(tile budget bytes, vmem_limit cap bytes) for this TPU generation."""
    try:
        cap = int(pltpu.get_tpu_info().vmem_capacity_bytes)
    except Exception:
        cap = 64 << 20                       # conservative: assume v7x-sized VMEM
    if cap >= (128 << 20):                   # v5e / v6e
        return 96 << 20, 110 << 20
    if cap >= (64 << 20):                    # v7x (leave headroom for internal scratch)
        return 44 << 20, 56 << 20
    return int(cap * 0.6), int(cap * 0.8)


def _vmem_bytes_estimate(tm, tc, d, mm_itemsize, dist_itemsize, emit_dist, nbuf_const):
    """Rough pipelined VMEM footprint of one (tm, tc) configuration."""
    x_b = 2 * tm * _round_up(d, 128) * 4                      # token tile (double buffered)
    emb_b = nbuf_const * _round_up(d, 8) * tc * mm_itemsize   # codebook tile
    esq_b = nbuf_const * 8 * tc * 4                           # ||embed||^2 tile
    ind_b = 2 * 8 * _round_up(tm, 128) * 4                    # (1, tm) index block
    dist_b = (2 * tm * tc * dist_itemsize) if emit_dist else 0
    scratch_b = 2 * 8 * _round_up(tm, 128) * 4                # running max / argmax scratch
    return x_b + emb_b + esq_b + ind_b + dist_b + scratch_b


def _select_tiles(m, d, c_pad, mm_itemsize, dist_itemsize, emit_dist, budget,
                  allow_single_buffer, tm_override, tc_override):
    """Pick (tm, tc): tm as large as the budget allows, then the largest tc
    (a 128-multiple divisor of c_pad) that still fits."""
    if tm_override is not None:
        tm_cands = [tm_override]
    elif m <= 512:
        tm_cands = [max(8, _round_up(m, 8))]        # single token tile
    elif m >= 2048:
        tm_cands = [1024, 512, 256, 128]            # 1024 is ~free on v5e/v6e when VMEM allows
    else:
        tm_cands = [512, 256, 128]

    def tc_for(tm):
        if tc_override is not None:
            return tc_override
        k = c_pad // 128
        for div in range(k, 0, -1):
            if k % div:
                continue
            tc = 128 * div
            nbuf = 1 if (allow_single_buffer and tc == c_pad) else 2
            if _vmem_bytes_estimate(tm, tc, d, mm_itemsize, dist_itemsize,
                                    emit_dist, nbuf) <= budget:
                return tc
        return None

    for tm in tm_cands:
        tc = tc_for(tm)
        if tc is not None:
            return tm, tc
    # Last resort: smallest tiles, rely on the vmem_limit headroom.
    return tm_cands[-1], (tc_override if tc_override is not None else min(c_pad, 128))


# ----------------------------------------------------------------------------- wrapper


def prepare_codebook(embed, *, use_bf16_matmul=False):
    """Precompute (and 128-pad) the kernel's constant codebook operands.

    Hoist this out of the hot loop when the codebook is static across calls and
    pass the results via embed_t= / embed_sq=.  Padded columns get
    ||embed||^2 = +inf so they can never win the argmax.
    """
    embed_f32 = embed.astype(jnp.float32)
    c, _ = embed_f32.shape
    mm_dtype = jnp.bfloat16 if use_bf16_matmul else jnp.float32
    c_pad = _round_up(c, 128)
    embed_t = embed_f32.T.astype(mm_dtype)                        # (D, C)
    embed_sq = jnp.sum(embed_f32 * embed_f32, axis=-1)[None, :]   # (1, C) f32
    if c_pad != c:
        embed_t = jnp.pad(embed_t, ((0, 0), (0, c_pad - c)))
        embed_sq = jnp.pad(embed_sq, ((0, 0), (0, c_pad - c)),
                           constant_values=jnp.inf)
    return embed_f32, embed_t, embed_sq


def euclidean_codebook_forward(x, embed, *, embed_t=None, embed_sq=None,
                               use_bf16_matmul=False, return_dist=True,
                               dist_dtype=jnp.float32, tm=None, tc=None):
    """Forward pass of EuclideanCodebook (initted=True, eval path).

    Returns (quantize, embed_ind, dist) matching the PyTorch module:
      quantize : x.shape                               (float32)
      embed_ind: x.shape[:-1]                          (int32; torch returns int64)
      dist     : (prod(x.shape[:-1]), codebook_size)   masked where >= -1e-6
                 (dtype dist_dtype; None when return_dist=False)
    """
    *lead, dim = x.shape
    c = embed.shape[0]
    embed_f32 = embed.astype(jnp.float32)

    if embed_t is None or embed_sq is None:
        _, embed_t, embed_sq = prepare_codebook(embed, use_bf16_matmul=use_bf16_matmul)
    c_pad = embed_t.shape[1]
    mm_itemsize = jnp.dtype(embed_t.dtype).itemsize
    dist_itemsize = jnp.dtype(dist_dtype).itemsize

    flatten = x.reshape(-1, dim).astype(jnp.float32)
    m = flatten.shape[0]

    budget, limit_cap = _vmem_caps()

    def run(single_buffer_constants):
        tm_sel, tc_sel = _select_tiles(
            m, dim, c_pad, mm_itemsize, dist_itemsize, return_dist, budget,
            allow_single_buffer=single_buffer_constants,
            tm_override=tm, tc_override=tc)

        m_pad = pl.cdiv(m, tm_sel) * tm_sel
        xf = flatten
        if m_pad != m:
            xf = jnp.pad(xf, ((0, m_pad - m), (0, 0)))

        grid = (m_pad // tm_sel, c_pad // tc_sel)

        # vmem_limit is sized for the double-buffered-constants worst case so the
        # fallback path always fits too; clamped to the per-generation cap.
        est_hi = _vmem_bytes_estimate(tm_sel, tc_sel, dim, mm_itemsize,
                                      dist_itemsize, return_dist, nbuf_const=2)
        vmem_limit = int(min(limit_cap, max(32 << 20, est_hi + (8 << 20))))

        const_kwargs = {}
        if single_buffer_constants and tc_sel == c_pad:
            # Constant codebook operands: one VMEM buffer is enough.
            const_kwargs["pipeline_mode"] = pl.Buffered(1)

        in_specs = [
            pl.BlockSpec((tm_sel, dim), lambda i, j: (i, 0)),            # token tile
            pl.BlockSpec((dim, tc_sel), lambda i, j: (0, j), **const_kwargs),  # codebook (D, tc)
            pl.BlockSpec((1, tc_sel), lambda i, j: (0, j), **const_kwargs),    # ||embed||^2
        ]
        out_shape = [jax.ShapeDtypeStruct((1, m_pad), jnp.int32)]        # lane-dense indices
        out_specs = [pl.BlockSpec((1, tm_sel), lambda i, j: (0, i))]
        if return_dist:
            out_shape.append(jax.ShapeDtypeStruct((m_pad, c_pad), dist_dtype))
            out_specs.append(pl.BlockSpec((tm_sel, tc_sel), lambda i, j: (i, j)))

        outs = pl.pallas_call(
            _make_codebook_kernel(return_dist),
            out_shape=tuple(out_shape),
            grid_spec=pltpu.PrefetchScalarGridSpec(
                num_scalar_prefetch=0,
                grid=grid,
                in_specs=in_specs,
                out_specs=out_specs,
                scratch_shapes=[pltpu.VMEM((1, tm_sel), jnp.float32),
                                pltpu.VMEM((1, tm_sel), jnp.int32)],
            ),
            compiler_params=pltpu.CompilerParams(
                # Token axis parallel (shards across v7x's 2 TCs); codebook axis
                # is the running-argmax reduction -> arbitrary, kept last.
                dimension_semantics=("parallel", "arbitrary"),
                vmem_limit_bytes=vmem_limit,
            ),
        )(xf, embed_t, embed_sq)

        if return_dist:
            ind_out, dist_out = outs
        else:
            ind_out = outs[0] if isinstance(outs, (tuple, list)) else outs
            dist_out = None
        return ind_out, dist_out

    try:
        ind, dist_pad = run(single_buffer_constants=True)
    except Exception:
        # pipeline_mode=Buffered(1) not accepted by this runtime: default pipeline.
        ind, dist_pad = run(single_buffer_constants=False)

    embed_ind_flat = ind[0, :m]
    # Embedding lookup kept out of the kernel: plain XLA gather (same HBM bytes,
    # removes the one-hot matmul + an extra pipelined output stream).
    quantize = jnp.take(embed_f32, embed_ind_flat, axis=0).reshape(*lead, dim)
    embed_ind = embed_ind_flat.reshape(*lead)
    dist = dist_pad[:m, :c] if return_dist else None
    return quantize, embed_ind, dist


def vector_quantize_forward(x, embed, *, channel_last=False, **kw):
    """Eval-mode VectorQuantize.forward with identity projections (codebook_dim == dim).

    Returns (quantize, embed_ind, commit_loss, dist) like the PyTorch module in eval().
    """
    if not channel_last:
        x = jnp.swapaxes(x, -1, -2)              # rearrange(x, 'b n d -> b d n')
    quantize, embed_ind, dist = euclidean_codebook_forward(x, embed, **kw)
    commit_loss = jnp.zeros((1,), jnp.float32)   # eval path: torch.tensor([0.0])
    if not channel_last:
        quantize = jnp.swapaxes(quantize, -1, -2)
    return quantize, embed_ind, commit_loss, dist


# ----------------------------------------------------------------------------- reference & test


def _reference_forward(x, embed):
    """Pure-JAX reference mirroring the PyTorch forward (initted=True)."""
    *lead, dim = x.shape
    flatten = x.reshape(-1, dim)
    dist = -(jnp.sum(flatten ** 2, axis=1, keepdims=True)
             - 2.0 * flatten @ embed.T
             + jnp.sum(embed ** 2, axis=1)[None, :])
    embed_ind = jnp.argmax(dist, axis=-1)
    quantize = embed[embed_ind].reshape(*lead, dim)
    dist = jnp.where(dist >= -1e-06, 0.0, dist)
    return quantize, embed_ind.reshape(*lead), dist


def _assert_indices_match(x, embed, ind_kernel, ind_ref, tol=1e-3):
    """Indices must agree except on genuine numerical near-ties of the distance."""
    flatten = x.reshape(-1, x.shape[-1]).astype(jnp.float32)
    ik = jnp.asarray(ind_kernel).reshape(-1).astype(jnp.int32)
    ir = jnp.asarray(ind_ref).reshape(-1).astype(jnp.int32)
    same = ik == ir
    dk = -jnp.sum((flatten - embed[ik]) ** 2, axis=-1)
    dr = -jnp.sum((flatten - embed[ir]) ** 2, axis=-1)
    ok = jnp.all(jnp.where(same, True, jnp.abs(dk - dr) <= tol))
    assert bool(ok), "codebook indices mismatch beyond numerical tie tolerance"


if __name__ == "__main__":
    # Module hyperparams (kmeans_init=False, weight_init=False -> embed ~ randn)
    dim = 32
    codebook_size = 256

    key = jax.random.PRNGKey(0)
    k_embed, k_x, k_embed2, k_x2 = jax.random.split(key, 4)
    embed = jax.random.normal(k_embed, (codebook_size, dim), dtype=jnp.float32)
    # x: (batch=2, seq=8, dim=32), feature dim last as in EuclideanCodebook.forward.
    x = jax.random.normal(k_x, (2, 8, dim), dtype=jnp.float32)

    # 1) basic forward (single codebook tile)
    quantize, embed_ind, dist = euclidean_codebook_forward(x, embed)
    jax.block_until_ready((quantize, embed_ind, dist))
    q_ref, i_ref, d_ref = _reference_forward(x, embed)
    assert quantize.shape == x.shape
    assert embed_ind.shape == x.shape[:-1]
    assert dist.shape == (x.shape[0] * x.shape[1], codebook_size)
    _assert_indices_match(x, embed, embed_ind, i_ref)
    assert jnp.array_equal(quantize.reshape(-1, dim), embed[embed_ind.reshape(-1)])
    assert jnp.allclose(dist, d_ref, atol=1e-3, rtol=1e-4)

    # 2) forced codebook-axis tiling (tc=128 -> 2 codebook tiles): running-argmax path
    q2, i2, d2 = euclidean_codebook_forward(x, embed, tc=128)
    jax.block_until_ready((q2, i2, d2))
    _assert_indices_match(x, embed, i2, i_ref)
    assert jnp.allclose(d2, d_ref, atol=5e-3, rtol=5e-4)

    # 3) non-128-multiple codebook (padded columns) + multiple token tiles (m=800 > 512)
    embed_odd = jax.random.normal(k_embed2, (200, dim), dtype=jnp.float32)
    x_big = jax.random.normal(k_x2, (4, 200, dim), dtype=jnp.float32)
    q3, i3, d3 = euclidean_codebook_forward(x_big, embed_odd)
    jax.block_until_ready((q3, i3, d3))
    q3r, i3r, d3r = _reference_forward(x_big, embed_odd)
    assert d3.shape == (800, 200)
    assert int(jnp.max(i3)) < 200          # padded columns never selected
    _assert_indices_match(x_big, embed_odd, i3, i3r)
    assert jnp.allclose(d3, d3r, atol=5e-3, rtol=5e-4)

    # 4) reduced / skipped dist output stream (API-opt-in; default keeps f32 parity)
    q4, i4, d4 = euclidean_codebook_forward(x, embed, return_dist=False)
    jax.block_until_ready((q4, i4))
    assert d4 is None
    _assert_indices_match(x, embed, i4, i_ref)
    q5, i5, d5 = euclidean_codebook_forward(x, embed, dist_dtype=jnp.bfloat16)
    jax.block_until_ready((q5, i5, d5))
    assert d5.dtype == jnp.bfloat16
    _assert_indices_match(x, embed, i5, i_ref)
    assert jnp.allclose(d5.astype(jnp.float32), d_ref, atol=1.0, rtol=2e-2)

    # 5) VectorQuantize eval wrapper (channels-first input, identity projections)
    x_cf = jnp.swapaxes(x, -1, -2)                        # (2, 32, 8)
    q_vq, i_vq, loss_vq, d_vq = vector_quantize_forward(x_cf, embed, channel_last=False)
    jax.block_until_ready((q_vq, i_vq, loss_vq, d_vq))
    assert q_vq.shape == x_cf.shape
    _assert_indices_match(x, embed, i_vq, i_ref)
    assert loss_vq.shape == (1,)

    # TODO(synk): kmeans init / EMA cluster-size updates / dead-code expiry and the
    # training-time commit loss + straight-through estimator are stateful/autograd
    # training paths, not part of the forward hot path; omitted.
    print("KERNEL_OK")
</pallas_src>

<mosaic_0001>
module attributes {stable_mosaic.version = 11 : i64} {
  func.func @kernel(%arg0: i32, %arg1: i32, %arg2: memref<16x32xf32, #tpu.memory_space<vmem>>, %arg3: memref<32x256xf32, #tpu.memory_space<vmem>>, %arg4: memref<1x256xf32, #tpu.memory_space<vmem>>, %arg5: memref<1x16xi32, #tpu.memory_space<vmem>>, %arg6: memref<16x256xf32, #tpu.memory_space<vmem>>, %arg7: memref<1x16xf32, #tpu.memory_space<vmem>>, %arg8: memref<1x16xi32, #tpu.memory_space<vmem>>) attributes {dimension_semantics = [#tpu.dimension_semantics<parallel>, #tpu.dimension_semantics<arbitrary>], iteration_bounds = array<i64: 1, 1>, scalar_prefetch = 0 : i64, scratch_operands = 2 : i64, tpu.core_type = #tpu.core_type<tc>, window_params = [{transform_indices = @transform_0, window_bounds = array<i64: 16, 32>}, {pipeline_mode = #tpu.pipeline_mode<synchronous>, transform_indices = @transform_1, window_bounds = array<i64: 32, 256>}, {pipeline_mode = #tpu.pipeline_mode<synchronous>, transform_indices = @transform_2, window_bounds = array<i64: 1, 256>}, {transform_indices = @transform_3, window_bounds = array<i64: 1, 16>}, {transform_indices = @transform_4, window_bounds = array<i64: 16, 256>}]} {
    %c0 = arith.constant 0 : index
    %c0_0 = arith.constant 0 : index
    %0 = vector.load %arg2[%c0, %c0_0] : memref<16x32xf32, #tpu.memory_space<vmem>>, vector<16x32xf32>
    %c0_1 = arith.constant 0 : index
    %c0_2 = arith.constant 0 : index
    %1 = vector.load %arg3[%c0_1, %c0_2] : memref<32x256xf32, #tpu.memory_space<vmem>>, vector<32x256xf32>
    %c0_3 = arith.constant 0 : index
    %c0_4 = arith.constant 0 : index
    %2 = vector.load %arg4[%c0_3, %c0_4] : memref<1x256xf32, #tpu.memory_space<vmem>>, vector<1x256xf32>
    %3 = arith.mulf %0, %0 : vector<16x32xf32>
    %cst = arith.constant dense<0.000000e+00> : vector<16xf32>
    %4 = vector.multi_reduction <add>, %3, %cst [1] : vector<16x32xf32> to vector<16xf32>
    %5 = vector.shape_cast %4 : vector<16xf32> to vector<16x1xf32>
    %cst_5 = arith.constant dense<0.000000e+00> : vector<16x256xf32>
    %6 = tpu.matmul %0, %1, %cst_5 {dimension_numbers = #tpu.dot_dimension_numbers<[1], [0], [0], [1], [0, 0, 1, 1], [], []>} : vector<16x32xf32>, vector<32x256xf32>, vector<16x256xf32> -> vector<16x256xf32>
    %cst_6 = arith.constant 2.000000e+00 : f32
    %7 = vector.broadcast %cst_6 : f32 to vector<16x256xf32>
    %8 = arith.mulf %7, %6 : vector<16x256xf32>
    %9 = vector.broadcast %5 : vector<16x1xf32> to vector<16x256xf32>
    %10 = arith.subf %9, %8 : vector<16x256xf32>
    %11 = vector.broadcast %2 : vector<1x256xf32> to vector<16x256xf32>
    %12 = arith.addf %10, %11 : vector<16x256xf32>
    %cst_7 = arith.constant 0.000000e+00 : f32
    %13 = vector.broadcast %cst_7 : f32 to vector<16x256xf32>
    %14 = arith.subf %13, %12 : vector<16x256xf32>
    %cst_8 = arith.constant -9.99999997E-7 : f32
    %15 = vector.broadcast %cst_8 : f32 to vector<16x256xf32>
    %16 = arith.cmpf oge, %14, %15 : vector<16x256xf32>
    %cst_9 = arith.constant 0.000000e+00 : f32
    %17 = vector.broadcast %cst_9 : f32 to vector<16x256xf32>
    %18 = arith.select %16, %17, %14 : vector<16x256xi1>, vector<16x256xf32>
    %c0_10 = arith.constant 0 : index
    %c0_11 = arith.constant 0 : index
    %19 = vector.load %arg6[%c0_10, %c0_11] : memref<16x256xf32, #tpu.memory_space<vmem>>, vector<16x256xf32>
    tpu.vector_store %arg6[%c0_10, %c0_11], %18 {strides = array<i32>} : memref<16x256xf32, #tpu.memory_space<vmem>>, vector<16x256xf32>,
    %cst_12 = arith.constant dense<0xFF800000> : vector<16xf32>
    %20 = vector.multi_reduction <maximumf>, %14, %cst_12 [1] : vector<16x256xf32> to vector<16xf32>
    %21 = vector.shape_cast %20 : vector<16xf32> to vector<1x16xf32>
    %22 = tpu.reduce_index %14 {axis = 1 : i32, kind = #tpu.reduction_kind<arg_max>} : vector<16x256xf32> -> vector<16xi32>
    %c256_i32 = arith.constant 256 : i32
    %23 = arith.muli %arg1, %c256_i32 : i32
    %24 = vector.broadcast %23 : i32 to vector<16xi32>
    %25 = arith.addi %22, %24 : vector<16xi32>
    %26 = vector.shape_cast %25 : vector<16xi32> to vector<1x16xi32>
    %c0_i32 = arith.constant 0 : i32
    %27 = arith.cmpi eq, %arg1, %c0_i32 : i32
    %28 = arith.extui %27 : i1 to i32
    %c0_i32_13 = arith.constant 0 : i32
    %29 = arith.cmpi ne, %28, %c0_i32_13 : i32
    scf.if %29 {
      %c0_18 = arith.constant 0 : index
      %c0_19 = arith.constant 0 : index
      %36 = vector.load %arg7[%c0_18, %c0_19] : memref<1x16xf32, #tpu.memory_space<vmem>>, vector<1x16xf32>
      tpu.vector_store %arg7[%c0_18, %c0_19], %21 {strides = array<i32>} : memref<1x16xf32, #tpu.memory_space<vmem>>, vector<1x16xf32>,
      %c0_20 = arith.constant 0 : index
      %c0_21 = arith.constant 0 : index
      %37 = vector.load %arg8[%c0_20, %c0_21] : memref<1x16xi32, #tpu.memory_space<vmem>>, vector<1x16xi32>
      tpu.vector_store %arg8[%c0_20, %c0_21], %26 {strides = array<i32>} : memref<1x16xi32, #tpu.memory_space<vmem>>, vector<1x16xi32>,
    } else {
    }
    %c0_i32_14 = arith.constant 0 : i32
    %30 = arith.cmpi sgt, %arg1, %c0_i32_14 : i32
    %31 = arith.extui %30 : i1 to i32
    %c0_i32_15 = arith.constant 0 : i32
    %32 = arith.cmpi ne, %31, %c0_i32_15 : i32
    scf.if %32 {
      %c0_18 = arith.constant 0 : index
      %c0_19 = arith.constant 0 : index
      %36 = vector.load %arg7[%c0_18, %c0_19] : memref<1x16xf32, #tpu.memory_space<vmem>>, vector<1x16xf32>
      %37 = arith.cmpf ogt, %21, %36 : vector<1x16xf32>
      %c0_20 = arith.constant 0 : index
      %c0_21 = arith.constant 0 : index
      %38 = vector.load %arg7[%c0_20, %c0_21] : memref<1x16xf32, #tpu.memory_space<vmem>>, vector<1x16xf32>
      %39 = arith.select %37, %21, %38 : vector<1x16xi1>, vector<1x16xf32>
      %c0_22 = arith.constant 0 : index
      %c0_23 = arith.constant 0 : index
      %40 = vector.load %arg7[%c0_22, %c0_23] : memref<1x16xf32, #tpu.memory_space<vmem>>, vector<1x16xf32>
      tpu.vector_store %arg7[%c0_22, %c0_23], %39 {strides = array<i32>} : memref<1x16xf32, #tpu.memory_space<vmem>>, vector<1x16xf32>,
      %c0_24 = arith.constant 0 : index
      %c0_25 = arith.constant 0 : index
      %41 = vector.load %arg8[%c0_24, %c0_25] : memref<1x16xi32, #tpu.memory_space<vmem>>, vector<1x16xi32>
      %42 = arith.select %37, %26, %41 : vector<1x16xi1>, vector<1x16xi32>
      %c0_26 = arith.constant 0 : index
      %c0_27 = arith.constant 0 : index
      %43 = vector.load %arg8[%c0_26, %c0_27] : memref<1x16xi32, #tpu.memory_space<vmem>>, vector<1x16xi32>
      tpu.vector_store %arg8[%c0_26, %c0_27], %42 {strides = array<i32>} : memref<1x16xi32, #tpu.memory_space<vmem>>, vector<1x16xi32>,
    } else {
    }
    %c0_i32_16 = arith.constant 0 : i32
    %33 = arith.cmpi eq, %arg1, %c0_i32_16 : i32
    %34 = arith.extui %33 : i1 to i32
    %c0_i32_17 = arith.constant 0 : i32
    %35 = arith.cmpi ne, %34, %c0_i32_17 : i32
    scf.if %35 {
      %c0_18 = arith.constant 0 : index
      %c0_19 = arith.constant 0 : index
      %36 = vector.load %arg8[%c0_18, %c0_19] : memref<1x16xi32, #tpu.memory_space<vmem>>, vector<1x16xi32>
      %c0_20 = arith.constant 0 : index
      %c0_21 = arith.constant 0 : index
      %37 = vector.load %arg5[%c0_20, %c0_21] : memref<1x16xi32, #tpu.memory_space<vmem>>, vector<1x16xi32>
      tpu.vector_store %arg5[%c0_20, %c0_21], %36 {strides = array<i32>} : memref<1x16xi32, #tpu.memory_space<vmem>>, vector<1x16xi32>,
    } else {
    }
    return
  }
  func.func @transform_0(%arg0: i32, %arg1: i32) -> (i32, i32) {
    %c0_i32 = arith.constant 0 : i32
    %c0_i32_0 = arith.constant 0 : i32
    return %arg0, %c0_i32 : i32, i32
  }
  func.func @transform_1(%arg0: i32, %arg1: i32) -> (i32, i32) {
    %c0_i32 = arith.constant 0 : i32
    %c0_i32_0 = arith.constant 0 : i32
    return %c0_i32, %arg1 : i32, i32
  }
  func.func @transform_2(%arg0: i32, %arg1: i32) -> (i32, i32) {
    %c0_i32 = arith.constant 0 : i32
    %c0_i32_0 = arith.constant 0 : i32
    return %c0_i32, %arg1 : i32, i32
  }
  func.func @transform_3(%arg0: i32, %arg1: i32) -> (i32, i32) {
    %c0_i32 = arith.constant 0 : i32
    %c0_i32_0 = arith.constant 0 : i32
    return %c0_i32, %arg0 : i32, i32
  }
  func.func @transform_4(%arg0: i32, %arg1: i32) -> (i32, i32) {
    %c0_i32 = arith.constant 0 : i32
    return %arg0, %arg1 : i32, i32
  }
}

module attributes {stable_mosaic.version = 11 : i64} {
  func.func @kernel(%arg0: i32, %arg1: i32, %arg2: memref<16x32xf32, #tpu.memory_space<vmem>>, %arg3: memref<32x256xf32, #tpu.memory_space<vmem>>, %arg4: memref<1x256xf32, #tpu.memory_space<vmem>>, %arg5: memref<1x16xi32, #tpu.memory_space<vmem>>, %arg6: memref<16x256xf32, #tpu.memory_space<vmem>>, %arg7: memref<1x16xf32, #tpu.memory_space<vmem>>, %arg8: memref<1x16xi32, #tpu.memory_space<vmem>>) attributes {dimension_semantics = [#tpu.dimension_semantics<parallel>, #tpu.dimension_semantics<arbitrary>], iteration_bounds = array<i64: 1, 1>, scalar_prefetch = 0 : i64, scratch_operands = 2 : i64, tpu.core_type = #tpu.core_type<tc>, window_params = [{transform_indices = @transform_0, window_bounds = array<i64: 16, 32>}, {transform_indices = @transform_1, window_bounds = array<i64: 32, 256>}, {transform_indices = @transform_2, window_bounds = array<i64: 1, 256>}, {transform_indices = @transform_3, window_bounds = array<i64: 1, 16>}, {transform_indices = @transform_4, window_bounds = array<i64: 16, 256>}]} {
    %c0 = arith.constant 0 : index
    %c0_0 = arith.constant 0 : index
    %0 = vector.load %arg2[%c0, %c0_0] : memref<16x32xf32, #tpu.memory_space<vmem>>, vector<16x32xf32>
    %c0_1 = arith.constant 0 : index
    %c0_2 = arith.constant 0 : index
    %1 = vector.load %arg3[%c0_1, %c0_2] : memref<32x256xf32, #tpu.memory_space<vmem>>, vector<32x256xf32>
    %c0_3 = arith.constant 0 : index
    %c0_4 = arith.constant 0 : index
    %2 = vector.load %arg4[%c0_3, %c0_4] : memref<1x256xf32, #tpu.memory_space<vmem>>, vector<1x256xf32>
    %3 = arith.mulf %0, %0 : vector<16x32xf32>
    %cst = arith.constant dense<0.000000e+00> : vector<16xf32>
    %4 = vector.multi_reduction <add>, %3, %cst [1] : vector<16x32xf32> to vector<16xf32>
    %5 = vector.shape_cast %4 : vector<16xf32> to vector<16x1xf32>
    %cst_5 = arith.constant dense<0.000000e+00> : vector<16x256xf32>
    %6 = tpu.matmul %0, %1, %cst_5 {dimension_numbers = #tpu.dot_dimension_numbers<[1], [0], [0], [1], [0, 0, 1, 1], [], []>} : vector<16x32xf32>, vector<32x256xf32>, vector<16x256xf32> -> vector<16x256xf32>
    %cst_6 = arith.constant 2.000000e+00 : f32
    %7 = vector.broadcast %cst_6 : f32 to vector<16x256xf32>
    %8 = arith.mulf %7, %6 : vector<16x256xf32>
    %9 = vector.broadcast %5 : vector<16x1xf32> to vector<16x256xf32>
    %10 = arith.subf %9, %8 : vector<16x256xf32>
    %11 = vector.broadcast %2 : vector<1x256xf32> to vector<16x256xf32>
    %12 = arith.addf %10, %11 : vector<16x256xf32>
    %cst_7 = arith.constant 0.000000e+00 : f32
    %13 = vector.broadcast %cst_7 : f32 to vector<16x256xf32>
    %14 = arith.subf %13, %12 : vector<16x256xf32>
    %cst_8 = arith.constant -9.99999997E-7 : f32
    %15 = vector.broadcast %cst_8 : f32 to vector<16x256xf32>
    %16 = arith.cmpf oge, %14, %15 : vector<16x256xf32>
    %cst_9 = arith.constant 0.000000e+00 : f32
    %17 = vector.broadcast %cst_9 : f32 to vector<16x256xf32>
    %18 = arith.select %16, %17, %14 : vector<16x256xi1>, vector<16x256xf32>
    %c0_10 = arith.constant 0 : index
    %c0_11 = arith.constant 0 : index
    %19 = vector.load %arg6[%c0_10, %c0_11] : memref<16x256xf32, #tpu.memory_space<vmem>>, vector<16x256xf32>
    tpu.vector_store %arg6[%c0_10, %c0_11], %18 {strides = array<i32>} : memref<16x256xf32, #tpu.memory_space<vmem>>, vector<16x256xf32>,
    %cst_12 = arith.constant dense<0xFF800000> : vector<16xf32>
    %20 = vector.multi_reduction <maximumf>, %14, %cst_12 [1] : vector<16x256xf32> to vector<16xf32>
    %21 = vector.shape_cast %20 : vector<16xf32> to vector<1x16xf32>
    %22 = tpu.reduce_index %14 {axis = 1 : i32, kind = #tpu.reduction_kind<arg_max>} : vector<16x256xf32> -> vector<16xi32>
    %c256_i32 = arith.constant 256 : i32
    %23 = arith.muli %arg1, %c256_i32 : i32
    %24 = vector.broadcast %23 : i32 to vector<16xi32>
    %25 = arith.addi %22, %24 : vector<16xi32>
    %26 = vector.shape_cast %25 : vector<16xi32> to vector<1x16xi32>
    %c0_i32 = arith.constant 0 : i32
    %27 = arith.cmpi eq, %arg1, %c0_i32 : i32
    %28 = arith.extui %27 : i1 to i32
    %c0_i32_13 = arith.constant 0 : i32
    %29 = arith.cmpi ne, %28, %c0_i32_13 : i32
    scf.if %29 {
      %c0_18 = arith.constant 0 : index
      %c0_19 = arith.constant 0 : index
      %36 = vector.load %arg7[%c0_18, %c0_19] : memref<1x16xf32, #tpu.memory_space<vmem>>, vector<1x16xf32>
      tpu.vector_store %arg7[%c0_18, %c0_19], %21 {strides = array<i32>} : memref<1x16xf32, #tpu.memory_space<vmem>>, vector<1x16xf32>,
      %c0_20 = arith.constant 0 : index
      %c0_21 = arith.constant 0 : index
      %37 = vector.load %arg8[%c0_20, %c0_21] : memref<1x16xi32, #tpu.memory_space<vmem>>, vector<1x16xi32>
      tpu.vector_store %arg8[%c0_20, %c0_21], %26 {strides = array<i32>} : memref<1x16xi32, #tpu.memory_space<vmem>>, vector<1x16xi32>,
    } else {
    }
    %c0_i32_14 = arith.constant 0 : i32
    %30 = arith.cmpi sgt, %arg1, %c0_i32_14 : i32
    %31 = arith.extui %30 : i1 to i32
    %c0_i32_15 = arith.constant 0 : i32
    %32 = arith.cmpi ne, %31, %c0_i32_15 : i32
    scf.if %32 {
      %c0_18 = arith.constant 0 : index
      %c0_19 = arith.constant 0 : index
      %36 = vector.load %arg7[%c0_18, %c0_19] : memref<1x16xf32, #tpu.memory_space<vmem>>, vector<1x16xf32>
      %37 = arith.cmpf ogt, %21, %36 : vector<1x16xf32>
      %c0_20 = arith.constant 0 : index
      %c0_21 = arith.constant 0 : index
      %38 = vector.load %arg7[%c0_20, %c0_21] : memref<1x16xf32, #tpu.memory_space<vmem>>, vector<1x16xf32>
      %39 = arith.select %37, %21, %38 : vector<1x16xi1>, vector<1x16xf32>
      %c0_22 = arith.constant 0 : index
      %c0_23 = arith.constant 0 : index
      %40 = vector.load %arg7[%c0_22, %c0_23] : memref<1x16xf32, #tpu.memory_space<vmem>>, vector<1x16xf32>
      tpu.vector_store %arg7[%c0_22, %c0_23], %39 {strides = array<i32>} : memref<1x16xf32, #tpu.memory_space<vmem>>, vector<1x16xf32>,
      %c0_24 = arith.constant 0 : index
      %c0_25 = arith.constant 0 : index
      %41 = vector.load %arg8[%c0_24, %c0_25] : memref<1x16xi32, #tpu.memory_space<vmem>>, vector<1x16xi32>
      %42 = arith.select %37, %26, %41 : vector<1x16xi1>, vector<1x16xi32>
      %c0_26 = arith.constant 0 : index
      %c0_27 = arith.constant 0 : index
      %43 = vector.load %arg8[%c0_26, %c0_27] : memref<1x16xi32, #tpu.memory_space<vmem>>, vector<1x16xi32>
      tpu.vector_store %arg8[%c0_26, %c0_27], %42 {strides = array<i32>} : memref<1x16xi32, #tpu.memory_space<vmem>>, vector<1x16xi32>,
    } else {
    }
    %c0_i32_16 = arith.constant 0 : i32
    %33 = arith.cmpi eq, %arg1, %c0_i32_16 : i32
    %34 = arith.extui %33 : i1 to i32
    %c0_i32_17 = arith.constant 0 : i32
    %35 = arith.cmpi ne, %34, %c0_i32_17 : i32
    scf.if %35 {
      %c0_18 = arith.constant 0 : index
      %c0_19 = arith.constant 0 : index
      %36 = vector.load %arg8[%c0_18, %c0_19] : memref<1x16xi32, #tpu.memory_space<vmem>>, vector<1x16xi32>
      %c0_20 = arith.constant 0 : index
      %c0_21 = arith.constant 0 : index
      %37 = vector.load %arg5[%c0_20, %c0_21] : memref<1x16xi32, #tpu.memory_space<vmem>>, vector<1x16xi32>
      tpu.vector_store %arg5[%c0_20, %c0_21], %36 {strides = array<i32>} : memref<1x16xi32, #tpu.memory_space<vmem>>, vector<1x16xi32>,
    } else {
    }
    return
  }
  func.func @transform_0(%arg0: i32, %arg1: i32) -> (i32, i32) {
    %c0_i32 = arith.constant 0 : i32
    %c0_i32_0 = arith.constant 0 : i32
    return %arg0, %c0_i32 : i32, i32
  }
  func.func @transform_1(%arg0: i32, %arg1: i32) -> (i32, i32) {
    %c0_i32 = arith.constant 0 : i32
    %c0_i32_0 = arith.constant 0 : i32
    return %c0_i32, %arg1 : i32, i32
  }
  func.func @transform_2(%arg0: i32, %arg1: i32) -> (i32, i32) {
    %c0_i32 = arith.constant 0 : i32
    %c0_i32_0 = arith.constant 0 : i32
    return %c0_i32, %arg1 : i32, i32
  }
  func.func @transform_3(%arg0: i32, %arg1: i32) -> (i32, i32) {
    %c0_i32 = arith.constant 0 : i32
    %c0_i32_0 = arith.constant 0 : i32
    return %c0_i32, %arg0 : i32, i32
  }
  func.func @transform_4(%arg0: i32, %arg1: i32) -> (i32, i32) {
    %c0_i32 = arith.constant 0 : i32
    return %arg0, %arg1 : i32, i32
  }
}

</mosaic_0001>

<llo_original>
// kernel: tpu_custom_call.1
$region0: #{tpu_custom_call.1}
  #allocation0 [shape = 'u32[]', space=smem, size = 0x4, offset = 0x4, fixed_abs, tag = 'smem constant byte address 0x4 - core index']
  #allocation1 [shape = 'u32[144,128]{1,0:T(1,128)}', space=vmem, size = 0x12000, scoped, tag = 'internal scratch']
  #allocation2 [shape = 'f32[1,16]{1,0:T(1,128)}', space=vmem, size = 0x200, scoped, tag = 'scratch operand']
  #allocation3 [shape = 's32[1,16]{1,0:T(1,128)}', space=vmem, size = 0x200, scoped, tag = 'scratch operand']
  %s0 = inlined_call_operand.hbm [shape: f32[16,32], index: 0, kind: input, shape index: {}]
  %s1 = inlined_call_operand.hbm [shape: f32[32,256], index: 1, kind: input, shape index: {}]
  %s2 = inlined_call_operand.vmem [shape: f32[1,256], index: 2, kind: input, shape index: {}]
  %s3 = inlined_call_operand.hbm [shape: s32[1,16], index: 3, kind: output, shape index: {0}]
  %s4 = inlined_call_operand.hbm [shape: f32[16,256], index: 4, kind: output, shape index: {1}]
  %5 = xla_tuple %s3, %s4
  %s6 = sld [smem:[#allocation0]]
  $region50: #{tpu_custom_call.1} parent=0
    _
  %s8 = ssub.s32 1, %s6
  %s9 = scalar_select 0, %s8, %s6
  $region1: #{tpu_custom_call.1} parent=0
    #allocation4 [shape = 'u8[8192]{0}', space=vmem, size = 0x2000, scoped, tag = 'input window, operand 0, single buffered']
    #allocation5 [shape = 's32[1]{0}', space=sflag, size = 0x4, scoped, tag = 'scoped memory for tpu_custom_call.1']
    #allocation6 [shape = 's32[1]{0}', space=sflag, size = 0x4, scoped, tag = 'scoped memory for tpu_custom_call.1']
    #allocation7 [shape = 'u8[32768]{0}', space=vmem, size = 0x8000, scoped, tag = 'input window, operand 1, single buffered']
    #allocation8 [shape = 's32[1]{0}', space=sflag, size = 0x4, scoped, tag = 'scoped memory for tpu_custom_call.1']
    #allocation9 [shape = 'u8[512]{0}', space=vmem, size = 0x400, scoped, tag = 'output window, operand 0, single buffered']
    #allocation10 [shape = 'u8[16384]{0}', space=vmem, size = 0x4000, scoped, tag = 'output window, operand 1, single buffered']
    #allocation11 [shape = 's32[1]{0}', space=sflag, size = 0x4, scoped, tag = 'scoped memory for tpu_custom_call.1']
    %10 = vsyncpa [#allocation5], 0
    %11 = vsyncpa [#allocation8], 0
    %12 = vsyncpa [#allocation6], 0
    %13 = vsyncpa [#allocation11], 0
    // Predicated region
    $region2: #{tpu_custom_call.1} parent=1 // pred_check
      _
    $region3: #{tpu_custom_call.1} parent=1 // pred_check_branch
      %15 = sbr.rel (0) target = $region5
    $region4: #{tpu_custom_call.1} parent=1 // pred_region
      %s17 = ssub.s32 256, 256
      %18 = vsyncadd [#allocation5], %s17
      %s19 = sshll.u32 [#allocation4], 4
      %s20 = int_to_ptr.vmem [resolvable:$true] %s19
      %25 = dma.hbm_to_vmem [thread:$0]  %s0, 256, %s20, [#allocation5], 128, 128, 8
    $region5: #{tpu_custom_call.1} parent=1 // pred_fallthru
      _
    // Predicated region
    $region6: #{tpu_custom_call.1} parent=1 // pred_check
      _
    $region7: #{tpu_custom_call.1} parent=1 // pred_check_branch
      %27 = sbr.rel (0) target = $region9
    $region8: #{tpu_custom_call.1} parent=1 // pred_region
      %s29 = ssub.s32 1024, 1024
      %30 = vsyncadd [#allocation8], %s29
      %s31 = sshll.u32 [#allocation7], 4
      %s32 = int_to_ptr.vmem [resolvable:$true] %s31
      %37 = dma.hbm_to_vmem [thread:$0]  %s1, 1024, %s32, [#allocation8], 256, 256, 16
    $region9: #{tpu_custom_call.1} parent=1 // pred_fallthru
      _
    // Predicated region
    $region10: #{tpu_custom_call.1} parent=1 // pred_check
      _
    $region11: #{tpu_custom_call.1} parent=1 // pred_check_branch
      %39 = sbr.rel (0) target = $region13
    $region12: #{tpu_custom_call.1} parent=1 // pred_region
      _
    $region13: #{tpu_custom_call.1} parent=1 // pred_fallthru
      _
    // Predicated region
    $region14: #{tpu_custom_call.1} parent=1 // pred_check
      _
    $region15: #{tpu_custom_call.1} parent=1 // pred_check_branch
      %41 = sbr.rel (0) target = $region17
    $region16: #{tpu_custom_call.1} parent=1 // pred_region
      %42 = dma.done [#allocation5], 256
    $region17: #{tpu_custom_call.1} parent=1 // pred_fallthru
      _
    // Predicated region
    $region18: #{tpu_custom_call.1} parent=1 // pred_check
      _
    $region19: #{tpu_custom_call.1} parent=1 // pred_check_branch
      %44 = sbr.rel (0) target = $region21
    $region20: #{tpu_custom_call.1} parent=1 // pred_region
      %45 = dma.done [#allocation8], 1024
    $region21: #{tpu_custom_call.1} parent=1 // pred_fallthru
      _
    %v46 = vld [vmem:[#allocation4] sm:$0xff]
    %v47 = vld [vmem:[#allocation4 + $0x8] sm:$0xff]
    %v48 = vld [vmem:[#allocation7] sm:$0xff]
    %v49 = vld [vmem:[#allocation7 + $0x8] sm:$0xff]
    %v50 = vld [vmem:[#allocation7 + $0x10] sm:$0xff]
    %v51 = vld [vmem:[#allocation7 + $0x18] sm:$0xff]
    %v52 = vld [vmem:[#allocation7 + $0x20] sm:$0xff]
    %v53 = vld [vmem:[#allocation7 + $0x28] sm:$0xff]
    %v54 = vld [vmem:[#allocation7 + $0x30] sm:$0xff]
    %v55 = vld [vmem:[#allocation7 + $0x38] sm:$0xff]
    %v56 = vld [vmem:[%s2] sm:$0x3]
    %v57 = vmul.f32 %v46, %v46
    %v58 = vmul.f32 %v47, %v47
    %vm59 = vcmask 261120
    %v60 = vsel %vm59, %v57, 0.0
    %61 = vadd.xlane.f32.xlu0 %v60
    %v62 = vpop.xlane.xlu0 %61
    %v63 = vsel %vm59, %v58, 0.0
    %64 = vadd.xlane.f32.xlu0 %v63
    %v65 = vpop.xlane.xlu0 %64
    %v67 = vsel %vm59, %v46, 0
    %v70 = vsel %vm59, %v47, 0
    %72 = vmatprep.subr.mxu0 %v49
    %73 = vmatpush1.msra.mxu0 %v48
    %74 = vmatprep.subr.mxu0 %v51
    %75 = vmatpush1.msra.mxu0 %v50
    %76 = vmatprep.subr.mxu0 %v53
    %77 = vmatpush1.msra.mxu0 %v52
    %78 = vmatprep.subr.mxu0 %v55
    %79 = vmatpush1.msra.mxu0 %v54
    %80 = vmatprep.subr.mxu0 0.0
    %81 = vmatpush1.msra.mxu0 0.0
    %82 = vmatprep.subr.mxu0 0.0
    %83 = vmatpush1.msra.mxu0 0.0
    %84 = vmatprep.subr.mxu0 0.0
    %85 = vmatpush1.msra.mxu0 0.0
    %86 = vmatprep.subr.mxu0 0.0
    %87 = vmatpush1.msra.mxu0 0.0
    %88 = vmatprep.subr.mxu0 0.0
    %89 = vmatpush1.msra.mxu0 0.0
    %90 = vmatprep.subr.mxu0 0.0
    %91 = vmatpush1.msra.mxu0 0.0
    %92 = vmatprep.subr.mxu0 0.0
    %93 = vmatpush1.msra.mxu0 0.0
    %94 = vmatprep.subr.mxu0 0.0
    %95 = vmatpush1.msra.mxu0 0.0
    %96 = vmatprep.subr.mxu0 0.0
    %97 = vmatpush1.msra.mxu0 0.0
    %98 = vmatprep.subr.mxu0 0.0
    %99 = vmatpush1.msra.mxu0 0.0
    %100 = vmatprep.subr.mxu0 0.0
    %101 = vmatpush1.msra.mxu0 0.0
    %102 = vmatprep.subr.mxu0 0.0
    %103 = vmatpush1.msra.mxu0 0.0
    %104 = vmatprep.subr.mxu0 0.0
    %105 = vmatpush1.msra.mxu0 0.0
    %106 = vmatprep.subr.mxu0 0.0
    %107 = vmatpush1.msra.mxu0 0.0
    %108 = vmatprep.subr.mxu0 0.0
    %109 = vmatpush1.msra.mxu0 0.0
    %110 = vmatprep.subr.mxu0 0.0
    %111 = vmatpush1.msra.mxu0 0.0
    %112 = vmatprep.subr.mxu0 0.0
    %113 = vmatpush1.msra.mxu0 0.0
    %114 = vmatprep.subr.mxu0 0.0
    %115 = vmatpush1.msra.mxu0 0.0
    %116 = vmatprep.subr.mxu0 0.0
    %117 = vmatpush1.msra.mxu0 0.0
    %118 = vmatprep.subr.mxu0 0.0
    %119 = vmatpush1.msra.mxu0 0.0
    %120 = vmatprep.subr.mxu0 0.0
    %121 = vmatpush1.msra.mxu0 0.0
    %122 = vmatprep.subr.mxu0 0.0
    %123 = vmatpush1.msra.mxu0 0.0
    %124 = vmatprep.subr.mxu0 0.0
    %125 = vmatpush1.msra.mxu0 0.0
    %126 = vmatprep.subr.mxu0 0.0
    %127 = vmatpush1.msra.mxu0 0.0
    %128 = vmatprep.subr.mxu0 0.0
    %129 = vmatpush1.msra.mxu0 0.0
    %130 = vmatprep.subr.mxu0 0.0
    %131 = vmatpush1.msra.mxu0 0.0
    %132 = vmatprep.subr.mxu0 0.0
    %133 = vmatpush1.msra.mxu0 0.0
    %134 = vmatprep.subr.mxu0 0.0
    %135 = vmatpush1.msra.mxu0 0.0
    %136 = vmatprep.mubr.f32.mxu0 0.0
    %137 = vmatmul.mubr.f32.gmra.mrb[0].mxu0 %v67
    %v138 = vpop.f32.mrb[0].mxu0
    %v139 = vadd.f32 0.0, %v138
    %v140 = vpop.f32.mrb[0].mxu0
    %v141 = vadd.f32 0.0, %v140
    %142 = vmatprep.mubr.f32.mxu0 0.0
    %143 = vmatmul.mubr.f32.gmra.mrb[0].mxu0 %v70
    %v144 = vpop.f32.mrb[0].mxu0
    %v145 = vadd.f32 0.0, %v144
    %v146 = vpop.f32.mrb[0].mxu0
    %v147 = vadd.f32 0.0, %v146
    %148 = vdwg.mxu0
    %v149 = vmul.f32 %v139, 2.0
    %v150 = vmul.f32 %v141, 2.0
    %v151 = vmul.f32 %v145, 2.0
    %v152 = vmul.f32 %v147, 2.0
    %v153 = vsub.f32 %v62, %v149
    %v154 = vsub.f32 %v62, %v150
    %v155 = vsub.f32 %v65, %v151
    %v156 = vsub.f32 %v65, %v152
    %v158 = vlaneseq
    %v159 = vshrl.u32 %v158, 7
    %v160 = vsub.s32 0, %v159
    %v161 = vrot.slane %v56, %v160
    %v162 = vlaneseq
    %v163 = vshrl.u32 %v162, 7
    %v164 = vsub.s32 1, %v163
    %v165 = vrot.slane %v56, %v164
    %v168 = vadd.f32 %v153, %v161
    %v169 = vadd.f32 %v154, %v165
    %v170 = vadd.f32 %v155, %v161
    %v171 = vadd.f32 %v156, %v165
    %v172 = vsub.f32 0.0, %v168
    %v173 = vsub.f32 0.0, %v169
    %v174 = vsub.f32 0.0, %v170
    %v175 = vsub.f32 0.0, %v171
    %vm176 = vcmp.ge.f32.partialorder %v172, -1e-06
    %vm177 = vcmp.ge.f32.partialorder %v173, -1e-06
    %vm178 = vcmp.ge.f32.partialorder %v174, -1e-06
    %vm179 = vcmp.ge.f32.partialorder %v175, -1e-06
    %v180 = vsel %vm176, 0.0, %v172
    %v181 = vsel %vm177, 0.0, %v173
    %v182 = vsel %vm178, 0.0, %v174
    %v183 = vsel %vm179, 0.0, %v175
    %184 = vst [vmem:[#allocation10] sm:$0xff] %v180
    %185 = vst [vmem:[#allocation10 + $0x8] sm:$0xff] %v181
    %186 = vst [vmem:[#allocation10 + $0x10] sm:$0xff] %v182
    %187 = vst [vmem:[#allocation10 + $0x18] sm:$0xff] %v183
    %v188 = vmax.f32 %v172, %v173
    %189 = vmax.xlane.f32.xlu0 %v188
    %v190 = vpop.xlane.xlu0 %189
    %v191 = vmax.f32 %v174, %v175
    %192 = vmax.xlane.f32.xlu0 %v191
    %v193 = vpop.xlane.xlu0 %192
    %v194 = vlaneseq
    %v195 = vand.u32 %v194, 127
    %v196 = vadd.s32 %v195, 128
    %vm197 = vcmp.ge.f32.partialorder %v172, %v173
    %v198 = vsel %vm197, %v172, %v173
    %v199 = vsel %vm197, %v195, %v196
    %200 = vmax.index.xlane.f32.xlu0 %v198
    %v201 = vpop.xlane.xlu0 %200
    %202 = vset.pattern.permute.xlu0 %v201
    %203 = vperm.xlu0 %202, %v199
    %v204 = vpop.permute.xlu0 %203
    %vm205 = vcmp.ge.f32.partialorder %v174, %v175
    %v206 = vsel %vm205, %v174, %v175
    %v207 = vsel %vm205, %v195, %v196
    %208 = vmax.index.xlane.f32.xlu0 %v206
    %v209 = vpop.xlane.xlu0 %208
    %210 = vset.pattern.permute.xlu0 %v209
    %211 = vperm.xlu0 %210, %v207
    %v212 = vpop.permute.xlu0 %211
    %s213 = smul.u32 0, 256
    %v214 = vstv %s213
    %v215 = vadd.s32 %v204, %v214
    %v216 = vadd.s32 %v212, %v214
    %p217 = scmp.eq.s32.totalorder 0, 0
    // Predicated region
    $region22: #{tpu_custom_call.1} parent=1 // pred_check
      %p218 = pneg %p217
    $region23: #{tpu_custom_call.1} parent=1 // pred_check_branch
      %220 = sbr.rel (%p218) target = $region25
    $region24: #{tpu_custom_call.1} parent=1 // pred_region
      %v223 = vlaneseq
      %v224 = vshrl.u32 %v223, 7
      %v225 = vsub.s32 %v195, %v224
      %v226 = vrot.slane %v190, %v225
      %v227 = vadd.s32 %v195, 4294967288
      %v228 = vlaneseq
      %v229 = vshrl.u32 %v228, 7
      %v230 = vsub.s32 %v227, %v229
      %v231 = vrot.slane %v193, %v230
      %vm232 = vcmask 130112
      %v233 = vsel %vm232, %v231, %v226
      %vm235 = vcmask 122880
      %236 = vst.msk [vmem:[#allocation2] sm:$0x1] %vm235, %v233
      %v237 = vlaneseq
      %v238 = vshrl.u32 %v237, 7
      %v239 = vsub.s32 %v195, %v238
      %v240 = vrot.slane %v215, %v239
      %v241 = vlaneseq
      %v242 = vshrl.u32 %v241, 7
      %v243 = vsub.s32 %v227, %v242
      %v244 = vrot.slane %v216, %v243
      %v245 = vsel %vm232, %v244, %v240
      %246 = vst.msk [vmem:[#allocation3] sm:$0x1] %vm235, %v245
    $region25: #{tpu_custom_call.1} parent=1 // pred_fallthru
      _
    %p247 = scmp.gt.s32.totalorder 0, 0
    // Predicated region
    $region26: #{tpu_custom_call.1} parent=1 // pred_check
      %p248 = pneg %p247
    $region27: #{tpu_custom_call.1} parent=1 // pred_check_branch
      %250 = sbr.rel (%p248) target = $region29
    $region28: #{tpu_custom_call.1} parent=1 // pred_region
      %v251 = vld [vmem:[#allocation2] sm:$0x1]
      %v253 = vlaneseq
      %v254 = vshrl.u32 %v253, 7
      %v255 = vsub.s32 0, %v254
      %v256 = vrot.slane %v251, %v255
      %258 = vbcast.lane.b32.xlu0 %v256, 256
      %v259 = vpop.permute.xlu0 %258
      %s261 = sor.u32 256, 8
      %262 = vbcast.lane.b32.xlu0 %v256, %s261
      %v263 = vpop.permute.xlu0 %262
      %vm266 = vcmp.gt.f32.partialorder %v190, %v259
      %vm267 = vcmp.gt.f32.partialorder %v193, %v263
      %v268 = vsel %vm266, %v190, %v259
      %v269 = vsel %vm267, %v193, %v263
      %272 = vset.pattern.permute.xlu0 0
      %273 = vperm.xlu0 %272, %v268
      %v274 = vpop.permute.xlu0 %273
      %275 = vset.pattern.permute.xlu0 0
      %276 = vperm.xlu0 %275, %v269
      %v277 = vpop.permute.xlu0 %276
      %v278 = vlaneseq
      %v279 = vshrl.u32 %v278, 7
      %v280 = vsub.s32 %v195, %v279
      %v281 = vrot.slane %v274, %v280
      %v282 = vadd.s32 %v195, 4294967288
      %v283 = vlaneseq
      %v284 = vshrl.u32 %v283, 7
      %v285 = vsub.s32 %v282, %v284
      %v286 = vrot.slane %v277, %v285
      %vm287 = vcmask 130112
      %v288 = vsel %vm287, %v286, %v281
      %vm290 = vcmask 122880
      %291 = vst.msk [vmem:[#allocation2] sm:$0x1] %vm290, %v288
      %v292 = vld [vmem:[#allocation3] sm:$0x1]
      %v293 = vlaneseq
      %v294 = vshrl.u32 %v293, 7
      %v295 = vsub.s32 0, %v294
      %v296 = vrot.slane %v292, %v295
      %298 = vbcast.lane.b32.xlu0 %v296, 256
      %v299 = vpop.permute.xlu0 %298
      %s301 = sor.u32 256, 8
      %302 = vbcast.lane.b32.xlu0 %v296, %s301
      %v303 = vpop.permute.xlu0 %302
      %v304 = vsel %vm266, %v215, %v299
      %v305 = vsel %vm267, %v216, %v303
      %306 = vset.pattern.permute.xlu0 0
      %307 = vperm.xlu0 %306, %v304
      %v308 = vpop.permute.xlu0 %307
      %309 = vset.pattern.permute.xlu0 0
      %310 = vperm.xlu0 %309, %v305
      %v311 = vpop.permute.xlu0 %310
      %v312 = vlaneseq
      %v313 = vshrl.u32 %v312, 7
      %v314 = vsub.s32 %v195, %v313
      %v315 = vrot.slane %v308, %v314
      %v316 = vlaneseq
      %v317 = vshrl.u32 %v316, 7
      %v318 = vsub.s32 %v282, %v317
      %v319 = vrot.slane %v311, %v318
      %v320 = vsel %vm287, %v319, %v315
      %321 = vst.msk [vmem:[#allocation3] sm:$0x1] %vm290, %v320
    $region29: #{tpu_custom_call.1} parent=1 // pred_fallthru
      _
    // Predicated region
    $region30: #{tpu_custom_call.1} parent=1 // pred_check
      %p322 = pneg %p217
    $region31: #{tpu_custom_call.1} parent=1 // pred_check_branch
      %324 = sbr.rel (%p322) target = $region33
    $region32: #{tpu_custom_call.1} parent=1 // pred_region
      %v325 = vld [vmem:[#allocation3] sm:$0x1]
      %vm326 = vcmask 122880
      %327 = vst.msk [vmem:[#allocation9] sm:$0x1] %vm326, %v325
    $region33: #{tpu_custom_call.1} parent=1 // pred_fallthru
      _
    // Predicated region
    $region34: #{tpu_custom_call.1} parent=1 // pred_check
      _
    $region35: #{tpu_custom_call.1} parent=1 // pred_check_branch
      %329 = sbr.rel (0) target = $region37
    $region36: #{tpu_custom_call.1} parent=1 // pred_region
      %s331 = ssub.s32 16, 16
      %332 = vsyncadd [#allocation6], %s331
      %s334 = sshll.u32 [#allocation9], 4
      %s335 = int_to_ptr.vmem [resolvable:$true] %s334
      %337 = dma.vmem_to_hbm [thread:$0]  %s335, 16, %s3, [#allocation6]
    $region37: #{tpu_custom_call.1} parent=1 // pred_fallthru
      _
    // Predicated region
    $region38: #{tpu_custom_call.1} parent=1 // pred_check
      _
    $region39: #{tpu_custom_call.1} parent=1 // pred_check_branch
      %339 = sbr.rel (0) target = $region41
    $region40: #{tpu_custom_call.1} parent=1 // pred_region
      %s341 = ssub.s32 512, 512
      %342 = vsyncadd [#allocation11], %s341
      %s343 = sshll.u32 [#allocation10], 4
      %s344 = int_to_ptr.vmem [resolvable:$true] %s343
      %349 = dma.vmem_to_hbm [thread:$0]  %s344, 512, %s4, [#allocation11], 256, 256, 16
    $region41: #{tpu_custom_call.1} parent=1 // pred_fallthru
      _
    // Predicated region
    $region42: #{tpu_custom_call.1} parent=1 // pred_check
      _
    $region43: #{tpu_custom_call.1} parent=1 // pred_check_branch
      %351 = sbr.rel (0) target = $region45
    $region44: #{tpu_custom_call.1} parent=1 // pred_region
      %352 = dma.done [#allocation6], 16
    $region45: #{tpu_custom_call.1} parent=1 // pred_fallthru
      _
    // Predicated region
    $region46: #{tpu_custom_call.1} parent=1 // pred_check
      _
    $region47: #{tpu_custom_call.1} parent=1 // pred_check_branch
      %354 = sbr.rel (0) target = $region49
    $region48: #{tpu_custom_call.1} parent=1 // pred_region
      %355 = dma.done [#allocation11], 512
    $region49: #{tpu_custom_call.1} parent=1 // pred_fallthru
      _
    %356 = vsyncpa [#allocation5], 1
    %357 = vsyncpa [#allocation8], 1
    %358 = vsyncpa [#allocation6], 1
    %359 = vsyncpa [#allocation11], 1

// kernel: tpu_custom_call.1
$region0: #{tpu_custom_call.1}
  #allocation0 [shape = 'u32[]', space=smem, size = 0x4, offset = 0x4, fixed_abs, tag = 'smem constant byte address 0x4 - core index']
  #allocation1 [shape = 'u32[144,128]{1,0:T(1,128)}', space=vmem, size = 0x12000, scoped, tag = 'internal scratch']
  #allocation2 [shape = 'f32[1,16]{1,0:T(1,128)}', space=vmem, size = 0x200, scoped, tag = 'scratch operand']
  #allocation3 [shape = 's32[1,16]{1,0:T(1,128)}', space=vmem, size = 0x200, scoped, tag = 'scratch operand']
  %s0 = inlined_call_operand.hbm [shape: f32[16,32], index: 0, kind: input, shape index: {}]
  %s1 = inlined_call_operand.hbm [shape: f32[32,256], index: 1, kind: input, shape index: {}]
  %s2 = inlined_call_operand.vmem [shape: f32[1,256], index: 2, kind: input, shape index: {}]
  %s3 = inlined_call_operand.hbm [shape: s32[1,16], index: 3, kind: output, shape index: {0}]
  %s4 = inlined_call_operand.hbm [shape: f32[16,256], index: 4, kind: output, shape index: {1}]
  %5 = xla_tuple %s3, %s4
  %s6 = sld [smem:[#allocation0]]
  $region50: #{tpu_custom_call.1} parent=0
    _
  %s8 = ssub.s32 1, %s6
  %s9 = scalar_select 0, %s8, %s6
  $region1: #{tpu_custom_call.1} parent=0
    #allocation4 [shape = 'u8[8192]{0}', space=vmem, size = 0x2000, scoped, tag = 'input window, operand 0, single buffered']
    #allocation5 [shape = 's32[1]{0}', space=sflag, size = 0x4, scoped, tag = 'scoped memory for tpu_custom_call.1']
    #allocation6 [shape = 's32[1]{0}', space=sflag, size = 0x4, scoped, tag = 'scoped memory for tpu_custom_call.1']
    #allocation7 [shape = 'u8[32768]{0}', space=vmem, size = 0x8000, scoped, tag = 'input window, operand 1, single buffered']
    #allocation8 [shape = 's32[1]{0}', space=sflag, size = 0x4, scoped, tag = 'scoped memory for tpu_custom_call.1']
    #allocation9 [shape = 'u8[512]{0}', space=vmem, size = 0x400, scoped, tag = 'output window, operand 0, single buffered']
    #allocation10 [shape = 'u8[16384]{0}', space=vmem, size = 0x4000, scoped, tag = 'output window, operand 1, single buffered']
    #allocation11 [shape = 's32[1]{0}', space=sflag, size = 0x4, scoped, tag = 'scoped memory for tpu_custom_call.1']
    %10 = vsyncpa [#allocation5], 0
    %11 = vsyncpa [#allocation8], 0
    %12 = vsyncpa [#allocation6], 0
    %13 = vsyncpa [#allocation11], 0
    // Predicated region
    $region2: #{tpu_custom_call.1} parent=1 // pred_check
      _
    $region3: #{tpu_custom_call.1} parent=1 // pred_check_branch
      %15 = sbr.rel (0) target = $region5
    $region4: #{tpu_custom_call.1} parent=1 // pred_region
      %s17 = ssub.s32 256, 256
      %18 = vsyncadd [#allocation5], %s17
      %s19 = sshll.u32 [#allocation4], 4
      %s20 = int_to_ptr.vmem [resolvable:$true] %s19
      %25 = dma.hbm_to_vmem [thread:$0]  %s0, 256, %s20, [#allocation5], 128, 128, 8
    $region5: #{tpu_custom_call.1} parent=1 // pred_fallthru
      _
    // Predicated region
    $region6: #{tpu_custom_call.1} parent=1 // pred_check
      _
    $region7: #{tpu_custom_call.1} parent=1 // pred_check_branch
      %27 = sbr.rel (0) target = $region9
    $region8: #{tpu_custom_call.1} parent=1 // pred_region
      %s29 = ssub.s32 1024, 1024
      %30 = vsyncadd [#allocation8], %s29
      %s31 = sshll.u32 [#allocation7], 4
      %s32 = int_to_ptr.vmem [resolvable:$true] %s31
      %37 = dma.hbm_to_vmem [thread:$0]  %s1, 1024, %s32, [#allocation8], 256, 256, 16
    $region9: #{tpu_custom_call.1} parent=1 // pred_fallthru
      _
    // Predicated region
    $region10: #{tpu_custom_call.1} parent=1 // pred_check
      _
    $region11: #{tpu_custom_call.1} parent=1 // pred_check_branch
      %39 = sbr.rel (0) target = $region13
    $region12: #{tpu_custom_call.1} parent=1 // pred_region
      _
    $region13: #{tpu_custom_call.1} parent=1 // pred_fallthru
      _
    // Predicated region
    $region14: #{tpu_custom_call.1} parent=1 // pred_check
      _
    $region15: #{tpu_custom_call.1} parent=1 // pred_check_branch
      %41 = sbr.rel (0) target = $region17
    $region16: #{tpu_custom_call.1} parent=1 // pred_region
      %42 = dma.done [#allocation5], 256
    $region17: #{tpu_custom_call.1} parent=1 // pred_fallthru
      _
    // Predicated region
    $region18: #{tpu_custom_call.1} parent=1 // pred_check
      _
    $region19: #{tpu_custom_call.1} parent=1 // pred_check_branch
      %44 = sbr.rel (0) target = $region21
    $region20: #{tpu_custom_call.1} parent=1 // pred_region
      %45 = dma.done [#allocation8], 1024
    $region21: #{tpu_custom_call.1} parent=1 // pred_fallthru
      _
    %v46 = vld [vmem:[#allocation4] sm:$0xff]
    %v47 = vld [vmem:[#allocation4 + $0x8] sm:$0xff]
    %v48 = vld [vmem:[#allocation7] sm:$0xff]
    %v49 = vld [vmem:[#allocation7 + $0x8] sm:$0xff]
    %v50 = vld [vmem:[#allocation7 + $0x10] sm:$0xff]
    %v51 = vld [vmem:[#allocation7 + $0x18] sm:$0xff]
    %v52 = vld [vmem:[#allocation7 + $0x20] sm:$0xff]
    %v53 = vld [vmem:[#allocation7 + $0x28] sm:$0xff]
    %v54 = vld [vmem:[#allocation7 + $0x30] sm:$0xff]
    %v55 = vld [vmem:[#allocation7 + $0x38] sm:$0xff]
    %v56 = vld [vmem:[%s2] sm:$0x3]
    %v57 = vmul.f32 %v46, %v46
    %v58 = vmul.f32 %v47, %v47
    %vm59 = vcmask 261120
    %v60 = vsel %vm59, %v57, 0.0
    %61 = vadd.xlane.f32.xlu0 %v60
    %v62 = vpop.xlane.xlu0 %61
    %v63 = vsel %vm59, %v58, 0.0
    %64 = vadd.xlane.f32.xlu0 %v63
    %v65 = vpop.xlane.xlu0 %64
    %v67 = vsel %vm59, %v46, 0
    %v70 = vsel %vm59, %v47, 0
    %72 = vmatprep.subr.mxu0 %v49
    %73 = vmatpush1.msra.mxu0 %v48
    %74 = vmatprep.subr.mxu0 %v51
    %75 = vmatpush1.msra.mxu0 %v50
    %76 = vmatprep.subr.mxu0 %v53
    %77 = vmatpush1.msra.mxu0 %v52
    %78 = vmatprep.subr.mxu0 %v55
    %79 = vmatpush1.msra.mxu0 %v54
    %80 = vmatprep.subr.mxu0 0.0
    %81 = vmatpush1.msra.mxu0 0.0
    %82 = vmatprep.subr.mxu0 0.0
    %83 = vmatpush1.msra.mxu0 0.0
    %84 = vmatprep.subr.mxu0 0.0
    %85 = vmatpush1.msra.mxu0 0.0
    %86 = vmatprep.subr.mxu0 0.0
    %87 = vmatpush1.msra.mxu0 0.0
    %88 = vmatprep.subr.mxu0 0.0
    %89 = vmatpush1.msra.mxu0 0.0
    %90 = vmatprep.subr.mxu0 0.0
    %91 = vmatpush1.msra.mxu0 0.0
    %92 = vmatprep.subr.mxu0 0.0
    %93 = vmatpush1.msra.mxu0 0.0
    %94 = vmatprep.subr.mxu0 0.0
    %95 = vmatpush1.msra.mxu0 0.0
    %96 = vmatprep.subr.mxu0 0.0
    %97 = vmatpush1.msra.mxu0 0.0
    %98 = vmatprep.subr.mxu0 0.0
    %99 = vmatpush1.msra.mxu0 0.0
    %100 = vmatprep.subr.mxu0 0.0
    %101 = vmatpush1.msra.mxu0 0.0
    %102 = vmatprep.subr.mxu0 0.0
    %103 = vmatpush1.msra.mxu0 0.0
    %104 = vmatprep.subr.mxu0 0.0
    %105 = vmatpush1.msra.mxu0 0.0
    %106 = vmatprep.subr.mxu0 0.0
    %107 = vmatpush1.msra.mxu0 0.0
    %108 = vmatprep.subr.mxu0 0.0
    %109 = vmatpush1.msra.mxu0 0.0
    %110 = vmatprep.subr.mxu0 0.0
    %111 = vmatpush1.msra.mxu0 0.0
    %112 = vmatprep.subr.mxu0 0.0
    %113 = vmatpush1.msra.mxu0 0.0
    %114 = vmatprep.subr.mxu0 0.0
    %115 = vmatpush1.msra.mxu0 0.0
    %116 = vmatprep.subr.mxu0 0.0
    %117 = vmatpush1.msra.mxu0 0.0
    %118 = vmatprep.subr.mxu0 0.0
    %119 = vmatpush1.msra.mxu0 0.0
    %120 = vmatprep.subr.mxu0 0.0
    %121 = vmatpush1.msra.mxu0 0.0
    %122 = vmatprep.subr.mxu0 0.0
    %123 = vmatpush1.msra.mxu0 0.0
    %124 = vmatprep.subr.mxu0 0.0
    %125 = vmatpush1.msra.mxu0 0.0
    %126 = vmatprep.subr.mxu0 0.0
    %127 = vmatpush1.msra.mxu0 0.0
    %128 = vmatprep.subr.mxu0 0.0
    %129 = vmatpush1.msra.mxu0 0.0
    %130 = vmatprep.subr.mxu0 0.0
    %131 = vmatpush1.msra.mxu0 0.0
    %132 = vmatprep.subr.mxu0 0.0
    %133 = vmatpush1.msra.mxu0 0.0
    %134 = vmatprep.subr.mxu0 0.0
    %135 = vmatpush1.msra.mxu0 0.0
    %136 = vmatprep.mubr.f32.mxu0 0.0
    %137 = vmatmul.mubr.f32.gmra.mrb[0].mxu0 %v67
    %v138 = vpop.f32.mrb[0].mxu0
    %v139 = vadd.f32 0.0, %v138
    %v140 = vpop.f32.mrb[0].mxu0
    %v141 = vadd.f32 0.0, %v140
    %142 = vmatprep.mubr.f32.mxu0 0.0
    %143 = vmatmul.mubr.f32.gmra.mrb[0].mxu0 %v70
    %v144 = vpop.f32.mrb[0].mxu0
    %v145 = vadd.f32 0.0, %v144
    %v146 = vpop.f32.mrb[0].mxu0
    %v147 = vadd.f32 0.0, %v146
    %148 = vdwg.mxu0
    %v149 = vmul.f32 %v139, 2.0
    %v150 = vmul.f32 %v141, 2.0
    %v151 = vmul.f32 %v145, 2.0
    %v152 = vmul.f32 %v147, 2.0
    %v153 = vsub.f32 %v62, %v149
    %v154 = vsub.f32 %v62, %v150
    %v155 = vsub.f32 %v65, %v151
    %v156 = vsub.f32 %v65, %v152
    %v158 = vlaneseq
    %v159 = vshrl.u32 %v158, 7
    %v160 = vsub.s32 0, %v159
    %v161 = vrot.slane %v56, %v160
    %v162 = vlaneseq
    %v163 = vshrl.u32 %v162, 7
    %v164 = vsub.s32 1, %v163
    %v165 = vrot.slane %v56, %v164
    %v168 = vadd.f32 %v153, %v161
    %v169 = vadd.f32 %v154, %v165
    %v170 = vadd.f32 %v155, %v161
    %v171 = vadd.f32 %v156, %v165
    %v172 = vsub.f32 0.0, %v168
    %v173 = vsub.f32 0.0, %v169
    %v174 = vsub.f32 0.0, %v170
    %v175 = vsub.f32 0.0, %v171
    %vm176 = vcmp.ge.f32.partialorder %v172, -1e-06
    %vm177 = vcmp.ge.f32.partialorder %v173, -1e-06
    %vm178 = vcmp.ge.f32.partialorder %v174, -1e-06
    %vm179 = vcmp.ge.f32.partialorder %v175, -1e-06
    %v180 = vsel %vm176, 0.0, %v172
    %v181 = vsel %vm177, 0.0, %v173
    %v182 = vsel %vm178, 0.0, %v174
    %v183 = vsel %vm179, 0.0, %v175
    %184 = vst [vmem:[#allocation10] sm:$0xff] %v180
    %185 = vst [vmem:[#allocation10 + $0x8] sm:$0xff] %v181
    %186 = vst [vmem:[#allocation10 + $0x10] sm:$0xff] %v182
    %187 = vst [vmem:[#allocation10 + $0x18] sm:$0xff] %v183
    %v188 = vmax.f32 %v172, %v173
    %189 = vmax.xlane.f32.xlu0 %v188
    %v190 = vpop.xlane.xlu0 %189
    %v191 = vmax.f32 %v174, %v175
    %192 = vmax.xlane.f32.xlu0 %v191
    %v193 = vpop.xlane.xlu0 %192
    %v194 = vlaneseq
    %v195 = vand.u32 %v194, 127
    %v196 = vadd.s32 %v195, 128
    %vm197 = vcmp.ge.f32.partialorder %v172, %v173
    %v198 = vsel %vm197, %v172, %v173
    %v199 = vsel %vm197, %v195, %v196
    %200 = vmax.index.xlane.f32.xlu0 %v198
    %v201 = vpop.xlane.xlu0 %200
    %202 = vset.pattern.permute.xlu0 %v201
    %203 = vperm.xlu0 %202, %v199
    %v204 = vpop.permute.xlu0 %203
    %vm205 = vcmp.ge.f32.partialorder %v174, %v175
    %v206 = vsel %vm205, %v174, %v175
    %v207 = vsel %vm205, %v195, %v196
    %208 = vmax.index.xlane.f32.xlu0 %v206
    %v209 = vpop.xlane.xlu0 %208
    %210 = vset.pattern.permute.xlu0 %v209
    %211 = vperm.xlu0 %210, %v207
    %v212 = vpop.permute.xlu0 %211
    %s213 = smul.u32 0, 256
    %v214 = vstv %s213
    %v215 = vadd.s32 %v204, %v214
    %v216 = vadd.s32 %v212, %v214
    %p217 = scmp.eq.s32.totalorder 0, 0
    // Predicated region
    $region22: #{tpu_custom_call.1} parent=1 // pred_check
      %p218 = pneg %p217
    $region23: #{tpu_custom_call.1} parent=1 // pred_check_branch
      %220 = sbr.rel (%p218) target = $region25
    $region24: #{tpu_custom_call.1} parent=1 // pred_region
      %v223 = vlaneseq
      %v224 = vshrl.u32 %v223, 7
      %v225 = vsub.s32 %v195, %v224
      %v226 = vrot.slane %v190, %v225
      %v227 = vadd.s32 %v195, 4294967288
      %v228 = vlaneseq
      %v229 = vshrl.u32 %v228, 7
      %v230 = vsub.s32 %v227, %v229
      %v231 = vrot.slane %v193, %v230
      %vm232 = vcmask 130112
      %v233 = vsel %vm232, %v231, %v226
      %vm235 = vcmask 122880
      %236 = vst.msk [vmem:[#allocation2] sm:$0x1] %vm235, %v233
      %v237 = vlaneseq
      %v238 = vshrl.u32 %v237, 7
      %v239 = vsub.s32 %v195, %v238
      %v240 = vrot.slane %v215, %v239
      %v241 = vlaneseq
      %v242 = vshrl.u32 %v241, 7
      %v243 = vsub.s32 %v227, %v242
      %v244 = vrot.slane %v216, %v243
      %v245 = vsel %vm232, %v244, %v240
      %246 = vst.msk [vmem:[#allocation3] sm:$0x1] %vm235, %v245
    $region25: #{tpu_custom_call.1} parent=1 // pred_fallthru
      _
    %p247 = scmp.gt.s32.totalorder 0, 0
    // Predicated region
    $region26: #{tpu_custom_call.1} parent=1 // pred_check
      %p248 = pneg %p247
    $region27: #{tpu_custom_call.1} parent=1 // pred_check_branch
      %250 = sbr.rel (%p248) target = $region29
    $region28: #{tpu_custom_call.1} parent=1 // pred_region
      %v251 = vld [vmem:[#allocation2] sm:$0x1]
      %v253 = vlaneseq
      %v254 = vshrl.u32 %v253, 7
      %v255 = vsub.s32 0, %v254
      %v256 = vrot.slane %v251, %v255
      %258 = vbcast.lane.b32.xlu0 %v256, 256
      %v259 = vpop.permute.xlu0 %258
      %s261 = sor.u32 256, 8
      %262 = vbcast.lane.b32.xlu0 %v256, %s261
      %v263 = vpop.permute.xlu0 %262
      %vm266 = vcmp.gt.f32.partialorder %v190, %v259
      %vm267 = vcmp.gt.f32.partialorder %v193, %v263
      %v268 = vsel %vm266, %v190, %v259
      %v269 = vsel %vm267, %v193, %v263
      %272 = vset.pattern.permute.xlu0 0
      %273 = vperm.xlu0 %272, %v268
      %v274 = vpop.permute.xlu0 %273
      %275 = vset.pattern.permute.xlu0 0
      %276 = vperm.xlu0 %275, %v269
      %v277 = vpop.permute.xlu0 %276
      %v278 = vlaneseq
      %v279 = vshrl.u32 %v278, 7
      %v280 = vsub.s32 %v195, %v279
      %v281 = vrot.slane %v274, %v280
      %v282 = vadd.s32 %v195, 4294967288
      %v283 = vlaneseq
      %v284 = vshrl.u32 %v283, 7
      %v285 = vsub.s32 %v282, %v284
      %v286 = vrot.slane %v277, %v285
      %vm287 = vcmask 130112
      %v288 = vsel %vm287, %v286, %v281
      %vm290 = vcmask 122880
      %291 = vst.msk [vmem:[#allocation2] sm:$0x1] %vm290, %v288
      %v292 = vld [vmem:[#allocation3] sm:$0x1]
      %v293 = vlaneseq
      %v294 = vshrl.u32 %v293, 7
      %v295 = vsub.s32 0, %v294
      %v296 = vrot.slane %v292, %v295
      %298 = vbcast.lane.b32.xlu0 %v296, 256
      %v299 = vpop.permute.xlu0 %298
      %s301 = sor.u32 256, 8
      %302 = vbcast.lane.b32.xlu0 %v296, %s301
      %v303 = vpop.permute.xlu0 %302
      %v304 = vsel %vm266, %v215, %v299
      %v305 = vsel %vm267, %v216, %v303
      %306 = vset.pattern.permute.xlu0 0
      %307 = vperm.xlu0 %306, %v304
      %v308 = vpop.permute.xlu0 %307
      %309 = vset.pattern.permute.xlu0 0
      %310 = vperm.xlu0 %309, %v305
      %v311 = vpop.permute.xlu0 %310
      %v312 = vlaneseq
      %v313 = vshrl.u32 %v312, 7
      %v314 = vsub.s32 %v195, %v313
      %v315 = vrot.slane %v308, %v314
      %v316 = vlaneseq
      %v317 = vshrl.u32 %v316, 7
      %v318 = vsub.s32 %v282, %v317
      %v319 = vrot.slane %v311, %v318
      %v320 = vsel %vm287, %v319, %v315
      %321 = vst.msk [vmem:[#allocation3] sm:$0x1] %vm290, %v320
    $region29: #{tpu_custom_call.1} parent=1 // pred_fallthru
      _
    // Predicated region
    $region30: #{tpu_custom_call.1} parent=1 // pred_check
      %p322 = pneg %p217
    $region31: #{tpu_custom_call.1} parent=1 // pred_check_branch
      %324 = sbr.rel (%p322) target = $region33
    $region32: #{tpu_custom_call.1} parent=1 // pred_region
      %v325 = vld [vmem:[#allocation3] sm:$0x1]
      %vm326 = vcmask 122880
      %327 = vst.msk [vmem:[#allocation9] sm:$0x1] %vm326, %v325
    $region33: #{tpu_custom_call.1} parent=1 // pred_fallthru
      _
    // Predicated region
    $region34: #{tpu_custom_call.1} parent=1 // pred_check
      _
    $region35: #{tpu_custom_call.1} parent=1 // pred_check_branch
      %329 = sbr.rel (0) target = $region37
    $region36: #{tpu_custom_call.1} parent=1 // pred_region
      %s331 = ssub.s32 16, 16
      %332 = vsyncadd [#allocation6], %s331
      %s334 = sshll.u32 [#allocation9], 4
      %s335 = int_to_ptr.vmem [resolvable:$true] %s334
      %337 = dma.vmem_to_hbm [thread:$0]  %s335, 16, %s3, [#allocation6]
    $region37: #{tpu_custom_call.1} parent=1 // pred_fallthru
      _
    // Predicated region
    $region38: #{tpu_custom_call.1} parent=1 // pred_check
      _
    $region39: #{tpu_custom_call.1} parent=1 // pred_check_branch
      %339 = sbr.rel (0) target = $region41
    $region40: #{tpu_custom_call.1} parent=1 // pred_region
      %s341 = ssub.s32 512, 512
      %342 = vsyncadd [#allocation11], %s341
      %s343 = sshll.u32 [#allocation10], 4
      %s344 = int_to_ptr.vmem [resolvable:$true] %s343
      %349 = dma.vmem_to_hbm [thread:$0]  %s344, 512, %s4, [#allocation11], 256, 256, 16
    $region41: #{tpu_custom_call.1} parent=1 // pred_fallthru
      _
    // Predicated region
    $region42: #{tpu_custom_call.1} parent=1 // pred_check
      _
    $region43: #{tpu_custom_call.1} parent=1 // pred_check_branch
      %351 = sbr.rel (0) target = $region45
    $region44: #{tpu_custom_call.1} parent=1 // pred_region
      %352 = dma.done [#allocation6], 16
    $region45: #{tpu_custom_call.1} parent=1 // pred_fallthru
      _
    // Predicated region
    $region46: #{tpu_custom_call.1} parent=1 // pred_check
      _
    $region47: #{tpu_custom_call.1} parent=1 // pred_check_branch
      %354 = sbr.rel (0) target = $region49
    $region48: #{tpu_custom_call.1} parent=1 // pred_region
      %355 = dma.done [#allocation11], 512
    $region49: #{tpu_custom_call.1} parent=1 // pred_fallthru
      _
    %356 = vsyncpa [#allocation5], 1
    %357 = vsyncpa [#allocation8], 1
    %358 = vsyncpa [#allocation6], 1
    %359 = vsyncpa [#allocation11], 1

</llo_original>
